<compile_context>
chip_gen: v6e
topology: v6e:2x2x1
jax: 0.10.0
libtpu: 0.0.40
codegen_flags: <defaults>
</compile_context>

<pallas_src>
import math

import jax
import jax.numpy as jnp
from jax.experimental import pallas as pl
from jax.experimental.pallas import tpu as pltpu


def make_sinusoidal_pe(max_len: int, d_model: int) -> jnp.ndarray:
    """Deterministic buffer construction, mirrors the PyTorch __init__ (glue, plain JAX)."""
    position = jnp.arange(0, max_len, dtype=jnp.float32)[:, None]            # (max_len, 1)
    div_term = jnp.exp(
        jnp.arange(0, d_model, 2, dtype=jnp.float32) * (-math.log(10000.0) / d_model)
    )                                                                         # (d_model/2,)
    pe = jnp.zeros((max_len, d_model), dtype=jnp.float32)
    pe = pe.at[:, 0::2].set(jnp.sin(position * div_term))
    pe = pe.at[:, 1::2].set(jnp.cos(position * div_term))
    # PyTorch keeps (max_len, 1, d_model); the singleton axis is broadcast-only.
    return pe


def _ape_add_kernel(x_ref, pe_ref, o_ref):
    # x_ref / o_ref: (TB, TF) tile; pe_ref: (1, TF) tile -> sublane-broadcast add on the
    # VPU (the broadcast is free filler hidden under DMA on this mem-bound kernel).
    o_ref[...] = x_ref[...] + pe_ref[...]


def _round_up(v: int, m: int) -> int:
    return ((v + m - 1) // m) * m


def _per_tile_cap_bytes() -> int:
    """~4 MiB tiles on v5e/v6e; ~8 MiB on v7x (3.2 TB/s HBM makes per-step overhead

    visible at 4 MiB, ~12% -> ~6%).  Falls back to 4 MiB if hw query is unavailable."""
    try:
        info = pltpu.get_tpu_info()
        if info.vmem_capacity_bytes <= (64 << 20):      # v7x: 64 MiB VMEM per TC
            return 8 << 20
    except Exception:
        pass
    return 4 << 20


def _pick_batch_tile(b: int, cap: int = 64) -> int:
    """Batch (sublane) tile: full dim if small, else 64 (multiple of 8); ragged edge
    blocks are masked by the cdiv grid."""
    return b if b <= cap else cap


def _pick_lane_tile(f: int, cap_elems: int) -> int:
    """Lane tile: full dim if it fits the byte budget, else the largest multiple of 128
    under the budget; ragged edge blocks are masked by the cdiv grid."""
    cap_elems = max(128, (cap_elems // 128) * 128)
    return f if f <= cap_elems else cap_elems


def absolute_positional_encoding(x: jnp.ndarray,
                                 pe: jnp.ndarray,
                                 dropout_rate: float = 0.0,
                                 training: bool = False) -> jnp.ndarray:
    """Forward pass: x + pe[:seq_len] (dropout is identity in eval mode)."""
    B, S, D = x.shape
    assert pe.shape[0] >= S and pe.shape[1] == D

    F = S * D
    x2 = x.reshape(B, F)                              # lane-dense flattened view
    pe2 = pe[:S].astype(x.dtype).reshape(1, F)        # hoisted dtype cast + flatten

    itemsize = jnp.dtype(x.dtype).itemsize

    TB = _pick_batch_tile(B)
    cap_elems = _per_tile_cap_bytes() // max(1, TB * itemsize)
    TF = _pick_lane_tile(F, cap_elems)

    n_f = pl.cdiv(F, TF)
    n_b = pl.cdiv(B, TB)

    # Guarantee >=2 grid steps when there is real work: v7x has 2 TensorCores and a
    # single-step grid also kills input/output pipelining.  Only split when the lone
    # tile is big enough (>=2 MiB) that the extra ~0.35 us step overhead is negligible.
    if n_f * n_b == 1 and F > 128 and TB * TF * itemsize >= (2 << 20):
        TF = max(128, _round_up(pl.cdiv(F, 2), 128))
        n_f = pl.cdiv(F, TF)

    # Grid is (flat tiles, batch tiles): the LAST axis varies fastest, so consecutive
    # steps sweep the batch while the pe block index (0, j) stays fixed -> pe is DMA'd
    # once per flat tile instead of once per step.
    grid = (n_f, n_b)

    cost = pl.CostEstimate(
        flops=B * F,                                   # one add per element
        transcendentals=0,
        bytes_accessed=(2 * B * F + F) * itemsize,     # read x + write out + read pe once
    )

    out2 = pl.pallas_call(
        _ape_add_kernel,
        out_shape=jax.ShapeDtypeStruct((B, F), x.dtype),
        grid=grid,
        in_specs=[
            pl.BlockSpec((TB, TF), lambda j, i: (i, j)),   # x tile
            pl.BlockSpec((1, TF), lambda j, i: (0, j)),    # pe tile (constant over inner axis)
        ],
        out_specs=pl.BlockSpec((TB, TF), lambda j, i: (i, j)),
        compiler_params=pltpu.CompilerParams(
            dimension_semantics=("parallel", "parallel"),
            # 2x double-buffered x + 2x out + pe: ~16.1 MiB (4 MiB tiles) / ~32.2 MiB
            # (8 MiB tiles).  Defaults are 16 MiB (v5e) / 32 MiB (v6e, v7x), so raise
            # explicitly; 48 MiB is within physical VMEM on every generation.
            vmem_limit_bytes=48 << 20,
        ),
        cost_estimate=cost,
    )(x2, pe2)

    if training and dropout_rate > 0.0:
        # TODO(synk): training-mode stochastic dropout (pltpu.prng_seed / prng_random_bits
        # fused into the add kernel) not implemented; this kernel provides eval semantics.
        raise NotImplementedError("training-mode dropout not implemented")

    return out2.reshape(B, S, D)


if __name__ == "__main__":
    d_model = 32
    max_len = 16
    dropout_rate = 0.1   # identity in eval mode
    batch, seq = 2, 8

    key = jax.random.PRNGKey(0)
    x = jax.random.normal(key, (batch, seq, d_model), dtype=jnp.float32)

    pe = make_sinusoidal_pe(max_len, d_model)

    out = absolute_positional_encoding(x, pe, dropout_rate=dropout_rate, training=False)
    out = jax.block_until_ready(out)

    # Pure-JAX reference (same semantics as the PyTorch forward in eval mode).
    ref = x + pe[:seq][None, :, :]
    assert out.shape == (batch, seq, d_model)
    assert jnp.allclose(out, ref, atol=1e-6, rtol=1e-6)

    # Second check: exercises the cdiv grid with a ragged (masked) batch edge block
    # (B=70 -> TB=64, 2 batch tiles) and a 128-multiple flattened lane axis.
    b2, s2, d2, ml2 = 70, 16, 24, 32
    x2 = jax.random.normal(jax.random.PRNGKey(1), (b2, s2, d2), dtype=jnp.float32)
    pe2 = make_sinusoidal_pe(ml2, d2)
    out2 = jax.block_until_ready(absolute_positional_encoding(x2, pe2))
    ref2 = x2 + pe2[:s2][None, :, :]
    assert jnp.allclose(out2, ref2, atol=1e-6, rtol=1e-6)

    print("KERNEL_OK")
</pallas_src>

<mosaic_0001>
module attributes {stable_mosaic.version = 11 : i64} {
  func.func @_ape_add_kernel(%arg0: i32, %arg1: i32, %arg2: memref<2x256xf32, #tpu.memory_space<vmem>>, %arg3: memref<1x256xf32, #tpu.memory_space<vmem>>, %arg4: memref<2x256xf32, #tpu.memory_space<vmem>>) attributes {dimension_semantics = [#tpu.dimension_semantics<parallel>, #tpu.dimension_semantics<parallel>], iteration_bounds = array<i64: 1, 1>, scalar_prefetch = 0 : i64, scratch_operands = 0 : i64, tpu.core_type = #tpu.core_type<tc>, window_params = [{transform_indices = @transform_0, window_bounds = array<i64: 2, 256>}, {transform_indices = @transform_1, window_bounds = array<i64: 1, 256>}, {transform_indices = @transform_2, window_bounds = array<i64: 2, 256>}]} {
    %c0 = arith.constant 0 : index
    %c0_0 = arith.constant 0 : index
    %0 = vector.load %arg2[%c0, %c0_0] : memref<2x256xf32, #tpu.memory_space<vmem>>, vector<2x256xf32>
    %c0_1 = arith.constant 0 : index
    %c0_2 = arith.constant 0 : index
    %1 = vector.load %arg3[%c0_1, %c0_2] : memref<1x256xf32, #tpu.memory_space<vmem>>, vector<1x256xf32>
    %2 = vector.broadcast %1 : vector<1x256xf32> to vector<2x256xf32>
    %3 = arith.addf %0, %2 : vector<2x256xf32>
    %c0_3 = arith.constant 0 : index
    %c0_4 = arith.constant 0 : index
    %4 = vector.load %arg4[%c0_3, %c0_4] : memref<2x256xf32, #tpu.memory_space<vmem>>, vector<2x256xf32>
    tpu.vector_store %arg4[%c0_3, %c0_4], %3 {strides = array<i32>} : memref<2x256xf32, #tpu.memory_space<vmem>>, vector<2x256xf32>,
    return
  }
  func.func @transform_0(%arg0: i32, %arg1: i32) -> (i32, i32) {
    %c0_i32 = arith.constant 0 : i32
    return %arg1, %arg0 : i32, i32
  }
  func.func @transform_1(%arg0: i32, %arg1: i32) -> (i32, i32) {
    %c0_i32 = arith.constant 0 : i32
    %c0_i32_0 = arith.constant 0 : i32
    return %c0_i32, %arg0 : i32, i32
  }
  func.func @transform_2(%arg0: i32, %arg1: i32) -> (i32, i32) {
    %c0_i32 = arith.constant 0 : i32
    return %arg1, %arg0 : i32, i32
  }
}

</mosaic_0001>

<llo_original>
// kernel: tpu_custom_call.1
$region0: #{tpu_custom_call.1}
  #allocation0 [shape = 'u32[]', space=smem, size = 0x4, offset = 0x4, fixed_abs, tag = 'smem constant byte address 0x4 - core index']
  #allocation1 [shape = 'u32[144,128]{1,0:T(1,128)}', space=vmem, size = 0x12000, scoped, tag = 'internal scratch']
  %s0 = inlined_call_operand.hbm [shape: f32[2,256], index: 0, kind: input, shape index: {}]
  %s1 = inlined_call_operand.hbm [shape: f32[1,256], index: 1, kind: input, shape index: {}]
  %s2 = inlined_call_operand.hbm [shape: f32[2,256], index: 2, kind: output, shape index: {}]
  %s3 = sld [smem:[#allocation0]]
  $region26: #{tpu_custom_call.1} parent=0
    _
  %s5 = ssub.s32 1, %s3
  %s6 = scalar_select 0, %s5, %s3
  $region1: #{tpu_custom_call.1} parent=0
    #allocation2 [shape = 'u8[2048]{0}', space=vmem, size = 0x800, scoped, tag = 'input window, operand 0, single buffered']
    #allocation3 [shape = 's32[1]{0}', space=sflag, size = 0x4, scoped, tag = 'scoped memory for tpu_custom_call.1']
    #allocation4 [shape = 's32[1]{0}', space=sflag, size = 0x4, scoped, tag = 'scoped memory for tpu_custom_call.1']
    #allocation5 [shape = 'u8[1024]{0}', space=vmem, size = 0x400, scoped, tag = 'input window, operand 1, single buffered']
    #allocation6 [shape = 's32[1]{0}', space=sflag, size = 0x4, scoped, tag = 'scoped memory for tpu_custom_call.1']
    #allocation7 [shape = 'u8[2048]{0}', space=vmem, size = 0x800, scoped, tag = 'output window, operand 0, single buffered']
    %7 = vsyncpa [#allocation3], 0
    %8 = vsyncpa [#allocation6], 0
    %9 = vsyncpa [#allocation4], 0
    // Predicated region
    $region2: #{tpu_custom_call.1} parent=1 // pred_check
      _
    $region3: #{tpu_custom_call.1} parent=1 // pred_check_branch
      %11 = sbr.rel (0) target = $region5
    $region4: #{tpu_custom_call.1} parent=1 // pred_region
      %s13 = ssub.s32 64, 64
      %14 = vsyncadd [#allocation3], %s13
      %s16 = sshll.u32 [#allocation2], 4
      %s17 = int_to_ptr.vmem [resolvable:$true] %s16
      %19 = dma.hbm_to_vmem [thread:$0]  %s0, 64, %s17, [#allocation3]
    $region5: #{tpu_custom_call.1} parent=1 // pred_fallthru
      _
    // Predicated region
    $region6: #{tpu_custom_call.1} parent=1 // pred_check
      _
    $region7: #{tpu_custom_call.1} parent=1 // pred_check_branch
      %21 = sbr.rel (0) target = $region9
    $region8: #{tpu_custom_call.1} parent=1 // pred_region
      %s23 = ssub.s32 32, 32
      %24 = vsyncadd [#allocation6], %s23
      %s26 = sshll.u32 [#allocation5], 4
      %s27 = int_to_ptr.vmem [resolvable:$true] %s26
      %29 = dma.hbm_to_vmem [thread:$0]  %s1, 32, %s27, [#allocation6]
    $region9: #{tpu_custom_call.1} parent=1 // pred_fallthru
      _
    // Predicated region
    $region10: #{tpu_custom_call.1} parent=1 // pred_check
      _
    $region11: #{tpu_custom_call.1} parent=1 // pred_check_branch
      %31 = sbr.rel (0) target = $region13
    $region12: #{tpu_custom_call.1} parent=1 // pred_region
      %32 = dma.done [#allocation3], 64
    $region13: #{tpu_custom_call.1} parent=1 // pred_fallthru
      _
    // Predicated region
    $region14: #{tpu_custom_call.1} parent=1 // pred_check
      _
    $region15: #{tpu_custom_call.1} parent=1 // pred_check_branch
      %34 = sbr.rel (0) target = $region17
    $region16: #{tpu_custom_call.1} parent=1 // pred_region
      %35 = dma.done [#allocation6], 32
    $region17: #{tpu_custom_call.1} parent=1 // pred_fallthru
      _
    %v36 = vld [vmem:[#allocation2] sm:$0xf]
    %v37 = vld [vmem:[#allocation5] sm:$0x3]
    %v39 = vlaneseq
    %v40 = vshrl.u32 %v39, 7
    %v41 = vsub.s32 0, %v40
    %v42 = vrot.slane %v37, %v41
    %v43 = vlaneseq
    %v44 = vshrl.u32 %v43, 7
    %v45 = vsub.s32 1, %v44
    %v46 = vrot.slane %v37, %v45
    %v47 = vcombine.low %v42, %v46
    %v49 = vunpack.c.l.s4 1983009808
    %v50 = vunpack.c.0.s8 %v49
    %v51 = vlaneseq
    %v52 = vshrl.u32 %v51, 7
    %v53 = vsub.s32 %v50, %v52
    %v54 = vrot.slane %v47, %v53
    %v56 = vadd.f32 %v36, %v54
    %57 = vst [vmem:[#allocation7] sm:$0xf] %v56
    // Predicated region
    $region18: #{tpu_custom_call.1} parent=1 // pred_check
      _
    $region19: #{tpu_custom_call.1} parent=1 // pred_check_branch
      %59 = sbr.rel (0) target = $region21
    $region20: #{tpu_custom_call.1} parent=1 // pred_region
      %s61 = ssub.s32 64, 64
      %62 = vsyncadd [#allocation4], %s61
      %s64 = sshll.u32 [#allocation7], 4
      %s65 = int_to_ptr.vmem [resolvable:$true] %s64
      %67 = dma.vmem_to_hbm [thread:$0]  %s65, 64, %s2, [#allocation4]
    $region21: #{tpu_custom_call.1} parent=1 // pred_fallthru
      _
    // Predicated region
    $region22: #{tpu_custom_call.1} parent=1 // pred_check
      _
    $region23: #{tpu_custom_call.1} parent=1 // pred_check_branch
      %69 = sbr.rel (0) target = $region25
    $region24: #{tpu_custom_call.1} parent=1 // pred_region
      %70 = dma.done [#allocation4], 64
    $region25: #{tpu_custom_call.1} parent=1 // pred_fallthru
      _
    %71 = vsyncpa [#allocation3], 1
    %72 = vsyncpa [#allocation6], 1
    %73 = vsyncpa [#allocation4], 1

</llo_original>
